<compile_context>
chip_gen: v5e
topology: v5e:2x2
jax: 0.10.0
libtpu: 0.0.40
codegen_flags: <defaults>
</compile_context>

<pallas_src>
import functools

import jax
import jax.numpy as jnp
from jax.experimental import pallas as pl
from jax.experimental.pallas import tpu as pltpu


# ---------------------------------------------------------------------------
# Kernels
# ---------------------------------------------------------------------------
def _act(name, v):
    if name == "tanh":
        return jnp.tanh(v)
    return jnp.maximum(v, 0.0)  # relu (module default)


def _res_kernel_resident(x_ref, w1_ref, b1_ref, w2_ref, b2_ref, o_ref, *,
                         compute_dtype, activation):
    """Both weights resident in VMEM; one tile of rows [tb, Dp] per grid step."""
    x = x_ref[...]                                              # (tb, Dp)
    h = jnp.dot(x.astype(compute_dtype), w1_ref[...],
                preferred_element_type=jnp.float32)
    h = _act(activation, h + b1_ref[...])                       # f32
    y = jnp.dot(h.astype(compute_dtype), w2_ref[...],
                preferred_element_type=jnp.float32)
    y = _act(activation, y + b2_ref[...])                       # f32
    o_ref[...] = (y + x.astype(jnp.float32)).astype(o_ref.dtype)


def _res_kernel_ktiled(x_ref, w1_ref, b1_ref, w2_ref, b2_ref, o_ref, acc_ref, *,
                       compute_dtype, activation):
    """Hidden dim tiled over grid axis 1; accumulate y in f32 VMEM scratch."""
    k = pl.program_id(1)

    @pl.when(k == 0)
    def _():
        acc_ref[...] = jnp.zeros_like(acc_ref)

    x = x_ref[...]                                              # (tb, Dp)
    h = jnp.dot(x.astype(compute_dtype), w1_ref[...],           # (tb, tk)
                preferred_element_type=jnp.float32)
    h = _act(activation, h + b1_ref[...])
    acc_ref[...] += jnp.dot(h.astype(compute_dtype), w2_ref[...],
                            preferred_element_type=jnp.float32)

    @pl.when(k == pl.num_programs(1) - 1)
    def _():
        y = _act(activation, acc_ref[...] + b2_ref[...])
        o_ref[...] = (y + x.astype(jnp.float32)).astype(o_ref.dtype)


# ---------------------------------------------------------------------------
# Capability / hardware probes (cached, run once per process)
# ---------------------------------------------------------------------------
@functools.lru_cache(maxsize=None)
def _single_buffer_supported():
    """One-time probe: does this JAX/Mosaic accept pipeline_mode=pl.Buffered(1)?"""
    def _k(x_ref, w_ref, o_ref):
        o_ref[...] = x_ref[...] + w_ref[...]

    try:
        f = pl.pallas_call(
            _k,
            out_shape=jax.ShapeDtypeStruct((16, 128), jnp.float32),
            grid_spec=pltpu.PrefetchScalarGridSpec(
                num_scalar_prefetch=0,
                grid=(2,),
                in_specs=[
                    pl.BlockSpec((8, 128), lambda i: (i, 0)),
                    pl.BlockSpec((8, 128), lambda i: (0, 0),
                                 pipeline_mode=pl.Buffered(1)),
                ],
                out_specs=pl.BlockSpec((8, 128), lambda i: (i, 0)),
            ),
        )
        jax.block_until_ready(
            f(jnp.zeros((16, 128), jnp.float32), jnp.zeros((8, 128), jnp.float32)))
        return True
    except Exception:
        return False


@functools.lru_cache(maxsize=None)
def _vmem_capacity_bytes():
    """Physical VMEM per core; conservative 64 MiB fallback (v7x size)."""
    try:
        info = pltpu.get_tpu_info()
        cap = getattr(info, "vmem_capacity_bytes", None)
        if cap:
            return int(cap)
    except Exception:
        pass
    return 64 * 1024 * 1024


# ---------------------------------------------------------------------------
# Tiling / VMEM configuration
# ---------------------------------------------------------------------------
def _round_up(n, m):
    return ((n + m - 1) // m) * m


def _cdiv(a, b):
    return -(-a // b)


def _choose_config(B, D, x_itemsize, w_itemsize, tb, tk, budget,
                   single_buffer, row_align):
    Dp = _round_up(D, 128)                       # lane-dense feature dim
    B_al = _round_up(B, row_align)
    wb = 1 if single_buffer else 2               # weight buffer count (resident)

    def resident_est(tb_):
        weights = wb * 2 * Dp * Dp * w_itemsize          # W1 + W2
        biases = wb * 2 * Dp * 4
        io = 4 * tb_ * Dp * x_itemsize                   # x / out, double-buffered
        inter = 12 * tb_ * Dp                            # f32 h, f32 y, bf16 x/h
        return weights + biases + io + inter

    def ktiled_est(tb_, tk_):
        weights = 4 * Dp * tk_ * w_itemsize              # W1/W2 tiles, double-buffered
        biases = 4 * tk_ * 4 + 4 * Dp * 4
        io = 4 * tb_ * Dp * x_itemsize                   # x / out, double-buffered
        acc = tb_ * Dp * 4                               # f32 accumulator scratch
        inter = 6 * tb_ * tk_ + 6 * tb_ * Dp             # f32+bf16 h, bf16 x, f32 y
        return weights + biases + io + acc + inter

    tb_user = tb

    # ---- resident path candidate (weights stay in VMEM across all row tiles) ----
    if tk is None:
        if tb_user is None:
            # >= ~4 row-tile grid steps when B allows: pipelining + megacore.
            tb_res = min(512, _round_up(max(_cdiv(B, 4), row_align), row_align))
        else:
            tb_res = _round_up(tb_user, row_align)
        tb_res = max(row_align, min(tb_res, B_al))
        while resident_est(tb_res) > budget and tb_res > row_align:
            tb_res = max(row_align, _round_up(tb_res // 2, row_align))
        if resident_est(tb_res) <= budget:
            return Dp, tb_res, None, resident_est(tb_res)

    # ---- K-tiled path (large D): stream weight tiles, accumulate in f32 ----
    if tk is None:
        tk = 512 if Dp % 512 == 0 else (256 if Dp % 256 == 0 else 128)
    if tb_user is None:
        tb_kt = min(1024, B_al)                          # big tb amortizes weight streaming
        if B_al // max(tb_kt, 1) < 2 and B_al >= 2 * row_align:
            tb_kt = _round_up(_cdiv(B_al, 2), row_align)  # keep >=2 parallel steps
    else:
        tb_kt = max(row_align, min(_round_up(tb_user, row_align), B_al))
    # Shrink order: tb (to 256) -> tk (to 256) -> tb (to row_align) -> tk (to 128).
    while ktiled_est(tb_kt, tk) > budget and tb_kt > 256:
        tb_kt = max(256, _round_up(tb_kt // 2, row_align))
    while ktiled_est(tb_kt, tk) > budget and tk > 256:
        tk //= 2
    while ktiled_est(tb_kt, tk) > budget and tb_kt > row_align:
        tb_kt = max(row_align, _round_up(tb_kt // 2, row_align))
    while ktiled_est(tb_kt, tk) > budget and tk > 128:
        tk //= 2
    return Dp, tb_kt, tk, ktiled_est(tb_kt, tk)


# ---------------------------------------------------------------------------
# Public wrapper
# ---------------------------------------------------------------------------
def res_layer(x, w1, b1, w2, b2, *, activation="relu", tb=None, tk=None,
              compute_dtype=jnp.bfloat16, vmem_budget_bytes=None):
    """Fused y = act(act(x @ w1 + b1) @ w2 + b2) + x.

    x: [B, D]; w1, w2: [D, D] stored as [D_in, D_out] (transposed vs. PyTorch
    nn.Linear.weight); b1, b2: [D] or [1, D].
    """
    x = jnp.asarray(x)
    B, D = x.shape
    w1 = jnp.asarray(w1)
    w2 = jnp.asarray(w2)
    b1 = jnp.asarray(b1).reshape(1, -1)
    b2 = jnp.asarray(b2).reshape(1, -1)
    assert w1.shape == (D, D) and w2.shape == (D, D), "residual needs in_dim == out_dim"
    assert b1.shape == (1, D) and b2.shape == (1, D)

    w_itemsize = jnp.dtype(compute_dtype).itemsize
    x_itemsize = jnp.dtype(x.dtype).itemsize
    row_align = 32 if w_itemsize < 4 else 8      # bf16 packs 16 rows/vreg -> 32-align

    single_buffer = _single_buffer_supported()
    cap = _vmem_capacity_bytes()
    budget = (int(vmem_budget_bytes) if vmem_budget_bytes is not None
              else int(0.80 * cap))

    Dp, tb, tk, vmem_est = _choose_config(B, D, x_itemsize, w_itemsize, tb, tk,
                                          budget, single_buffer, row_align)
    if tk is not None:
        assert Dp % tk == 0 and tk % 128 == 0
    Bp = _round_up(B, tb)

    # Zero-pad batch rows to the row tile and features to a 128-lane multiple.
    # Zero padding is exact for this layer (act(0) == 0 for relu/tanh); padded
    # rows are sliced off at the end.
    if (Bp, Dp) != (B, D):
        x = jnp.pad(x, ((0, Bp - B), (0, Dp - D)))
        w1 = jnp.pad(w1, ((0, Dp - D), (0, Dp - D)))
        w2 = jnp.pad(w2, ((0, Dp - D), (0, Dp - D)))
        b1 = jnp.pad(b1, ((0, 0), (0, Dp - D)))
        b2 = jnp.pad(b2, ((0, 0), (0, Dp - D)))

    w1 = w1.astype(compute_dtype)       # MXU inputs (bf16 by default)
    w2 = w2.astype(compute_dtype)
    b1 = b1.astype(jnp.float32)         # bias / activation / residual in f32
    b2 = b2.astype(jnp.float32)

    weight_passes = (Bp // tb) if tk is not None else 1   # K-tiled re-streams weights
    cost = pl.CostEstimate(
        flops=4 * B * D * D,                               # two BxDxD matmuls
        transcendentals=(2 * B * D) if activation == "tanh" else 0,
        bytes_accessed=(2 * Bp * Dp * x_itemsize
                        + weight_passes * 2 * Dp * Dp * w_itemsize
                        + 2 * Dp * 4),
    )
    vmem_limit = int(min(int(0.85 * cap),
                         max(32 * 1024 * 1024, int(1.3 * vmem_est))))
    vmem_limit = max(vmem_limit, int(vmem_est))

    out_shape = jax.ShapeDtypeStruct((Bp, Dp), x.dtype)
    kernel_kwargs = dict(compute_dtype=compute_dtype, activation=activation)

    if tk is None:
        # ----- fully-resident weights, 1-D "parallel" grid over row tiles -----
        wkw = {"pipeline_mode": pl.Buffered(1)} if single_buffer else {}
        out = pl.pallas_call(
            functools.partial(_res_kernel_resident, **kernel_kwargs),
            out_shape=out_shape,
            grid_spec=pltpu.PrefetchScalarGridSpec(
                num_scalar_prefetch=0,
                grid=(Bp // tb,),
                in_specs=[
                    pl.BlockSpec((tb, Dp), lambda i: (i, 0)),          # x rows
                    pl.BlockSpec((Dp, Dp), lambda i: (0, 0), **wkw),   # W1
                    pl.BlockSpec((1, Dp), lambda i: (0, 0), **wkw),    # b1
                    pl.BlockSpec((Dp, Dp), lambda i: (0, 0), **wkw),   # W2
                    pl.BlockSpec((1, Dp), lambda i: (0, 0), **wkw),    # b2
                ],
                out_specs=pl.BlockSpec((tb, Dp), lambda i: (i, 0)),
            ),
            compiler_params=pltpu.CompilerParams(
                dimension_semantics=("parallel",),
                vmem_limit_bytes=vmem_limit),
            cost_estimate=cost,
        )(x, w1, b1, w2, b2)
    else:
        # ----- hidden-dim (K) tiled path for large D -----
        out = pl.pallas_call(
            functools.partial(_res_kernel_ktiled, **kernel_kwargs),
            out_shape=out_shape,
            grid_spec=pltpu.PrefetchScalarGridSpec(
                num_scalar_prefetch=0,
                grid=(Bp // tb, Dp // tk),
                in_specs=[
                    pl.BlockSpec((tb, Dp), lambda i, k: (i, 0)),   # x rows (resident over k)
                    pl.BlockSpec((Dp, tk), lambda i, k: (0, k)),   # W1 column tile
                    pl.BlockSpec((1, tk), lambda i, k: (0, k)),    # b1 tile
                    pl.BlockSpec((tk, Dp), lambda i, k: (k, 0)),   # W2 row tile
                    pl.BlockSpec((1, Dp), lambda i, k: (0, 0)),    # b2
                ],
                out_specs=pl.BlockSpec((tb, Dp), lambda i, k: (i, 0)),
                scratch_shapes=[pltpu.VMEM((tb, Dp), jnp.float32)],
            ),
            compiler_params=pltpu.CompilerParams(
                dimension_semantics=("parallel", "arbitrary"),
                vmem_limit_bytes=vmem_limit),
            cost_estimate=cost,
        )(x, w1, b1, w2, b2)

    return out[:B, :D]


# ---------------------------------------------------------------------------
# Demo / self-check
# ---------------------------------------------------------------------------
def _reference(x, w1, b1, w2, b2, activation="relu", matmul_dtype=jnp.float32):
    act = jnp.tanh if activation == "tanh" else (lambda v: jnp.maximum(v, 0.0))
    h = act(jnp.dot(x.astype(matmul_dtype), w1.astype(matmul_dtype),
                    preferred_element_type=jnp.float32) + b1)
    y = act(jnp.dot(h.astype(matmul_dtype), w2.astype(matmul_dtype),
                    preferred_element_type=jnp.float32) + b2)
    return (y + x).astype(x.dtype)


def _make_params(key, B, D):
    kx, k1, k2, k3, k4 = jax.random.split(key, 5)
    bound = 1.0 / (D ** 0.5)                       # nn.Linear-style init
    x = jax.random.normal(kx, (B, D), jnp.float32)
    w1 = jax.random.uniform(k1, (D, D), jnp.float32, -bound, bound)   # [D_in, D_out]
    b1 = jax.random.uniform(k2, (D,), jnp.float32, -bound, bound)
    w2 = jax.random.uniform(k3, (D, D), jnp.float32, -bound, bound)
    b2 = jax.random.uniform(k4, (D,), jnp.float32, -bound, bound)
    return x, w1, b1, w2, b2


if __name__ == "__main__":
    # 1) Lane-aligned shapes -> resident-weight path. tb is chosen so the row
    #    axis has ~4 "parallel" grid steps (pipelining + v7x megacore sharding).
    B, D = 256, 256
    x, w1, b1, w2, b2 = _make_params(jax.random.PRNGKey(0), B, D)
    out = jax.block_until_ready(res_layer(x, w1, b1, w2, b2))
    assert out.shape == (B, D) and out.dtype == x.dtype
    ref_bf16 = _reference(x, w1, b1, w2, b2, matmul_dtype=jnp.bfloat16)
    ref_f32 = _reference(x, w1, b1, w2, b2, matmul_dtype=jnp.float32)
    assert jnp.allclose(out, ref_bf16, atol=2e-3, rtol=2e-3)
    assert jnp.allclose(out, ref_f32, atol=6e-2, rtol=6e-2)

    # 2) Ragged shapes + tiny VMEM budget -> exercises B/D zero-padding and the
    #    hidden-dim (K-tiled) accumulation path with the new shrink ordering.
    B2, D2 = 200, 192
    x2, w1_2, b1_2, w2_2, b2_2 = _make_params(jax.random.PRNGKey(1), B2, D2)
    out2 = jax.block_until_ready(
        res_layer(x2, w1_2, b1_2, w2_2, b2_2, tk=128, vmem_budget_bytes=1 << 20))
    assert out2.shape == (B2, D2) and out2.dtype == x2.dtype
    ref2 = _reference(x2, w1_2, b1_2, w2_2, b2_2, matmul_dtype=jnp.bfloat16)
    assert jnp.allclose(out2, ref2, atol=2e-3, rtol=2e-3)

    # 3) Tanh activation path (module supports relu/tanh).
    out3 = jax.block_until_ready(res_layer(x, w1, b1, w2, b2, activation="tanh"))
    ref3 = _reference(x, w1, b1, w2, b2, activation="tanh", matmul_dtype=jnp.bfloat16)
    assert jnp.allclose(out3, ref3, atol=3e-3, rtol=3e-3)

    print("KERNEL_OK")
</pallas_src>

<mosaic_0001>
module attributes {stable_mosaic.version = 11 : i64} {
  func.func @_k(%arg0: i32, %arg1: memref<8x128xf32, #tpu.memory_space<vmem>>, %arg2: memref<8x128xf32, #tpu.memory_space<vmem>>, %arg3: memref<8x128xf32, #tpu.memory_space<vmem>>) attributes {dimension_semantics = [#tpu.dimension_semantics<arbitrary>], iteration_bounds = array<i64: 2>, scalar_prefetch = 0 : i64, scratch_operands = 0 : i64, tpu.core_type = #tpu.core_type<tc>, window_params = [{transform_indices = @transform_0, window_bounds = array<i64: 8, 128>}, {pipeline_mode = #tpu.pipeline_mode<synchronous>, transform_indices = @transform_1, window_bounds = array<i64: 8, 128>}, {transform_indices = @transform_2, window_bounds = array<i64: 8, 128>}]} {
    %c0 = arith.constant 0 : index
    %c0_0 = arith.constant 0 : index
    %0 = vector.load %arg1[%c0, %c0_0] : memref<8x128xf32, #tpu.memory_space<vmem>>, vector<8x128xf32>
    %c0_1 = arith.constant 0 : index
    %c0_2 = arith.constant 0 : index
    %1 = vector.load %arg2[%c0_1, %c0_2] : memref<8x128xf32, #tpu.memory_space<vmem>>, vector<8x128xf32>
    %2 = arith.addf %0, %1 : vector<8x128xf32>
    %c0_3 = arith.constant 0 : index
    %c0_4 = arith.constant 0 : index
    %3 = vector.load %arg3[%c0_3, %c0_4] : memref<8x128xf32, #tpu.memory_space<vmem>>, vector<8x128xf32>
    tpu.vector_store %arg3[%c0_3, %c0_4], %2 {strides = array<i32>} : memref<8x128xf32, #tpu.memory_space<vmem>>, vector<8x128xf32>,
    return
  }
  func.func @transform_0(%arg0: i32) -> (i32, i32) {
    %c0_i32 = arith.constant 0 : i32
    %c0_i32_0 = arith.constant 0 : i32
    return %arg0, %c0_i32 : i32, i32
  }
  func.func @transform_1(%arg0: i32) -> (i32, i32) {
    %c0_i32 = arith.constant 0 : i32
    %c0_i32_0 = arith.constant 0 : i32
    %c0_i32_1 = arith.constant 0 : i32
    return %c0_i32, %c0_i32_0 : i32, i32
  }
  func.func @transform_2(%arg0: i32) -> (i32, i32) {
    %c0_i32 = arith.constant 0 : i32
    %c0_i32_0 = arith.constant 0 : i32
    return %arg0, %c0_i32 : i32, i32
  }
}

module attributes {stable_mosaic.version = 11 : i64} {
  func.func @_res_kernel_resident(%arg0: i32, %arg1: memref<64x256xf32, #tpu.memory_space<vmem>>, %arg2: memref<256x256xbf16, #tpu.memory_space<vmem>>, %arg3: memref<1x256xf32, #tpu.memory_space<vmem>>, %arg4: memref<256x256xbf16, #tpu.memory_space<vmem>>, %arg5: memref<1x256xf32, #tpu.memory_space<vmem>>, %arg6: memref<64x256xf32, #tpu.memory_space<vmem>>) attributes {dimension_semantics = [#tpu.dimension_semantics<parallel>], iteration_bounds = array<i64: 4>, scalar_prefetch = 0 : i64, scratch_operands = 0 : i64, tpu.core_type = #tpu.core_type<tc>, window_params = [{transform_indices = @transform_0, window_bounds = array<i64: 64, 256>}, {pipeline_mode = #tpu.pipeline_mode<synchronous>, transform_indices = @transform_1, window_bounds = array<i64: 256, 256>}, {pipeline_mode = #tpu.pipeline_mode<synchronous>, transform_indices = @transform_2, window_bounds = array<i64: 1, 256>}, {pipeline_mode = #tpu.pipeline_mode<synchronous>, transform_indices = @transform_3, window_bounds = array<i64: 256, 256>}, {pipeline_mode = #tpu.pipeline_mode<synchronous>, transform_indices = @transform_4, window_bounds = array<i64: 1, 256>}, {transform_indices = @transform_5, window_bounds = array<i64: 64, 256>}]} {
    %c0 = arith.constant 0 : index
    %c0_0 = arith.constant 0 : index
    %0 = vector.load %arg1[%c0, %c0_0] : memref<64x256xf32, #tpu.memory_space<vmem>>, vector<64x256xf32>
    %1 = arith.truncf %0 : vector<64x256xf32> to vector<64x256xbf16>
    %c0_1 = arith.constant 0 : index
    %c0_2 = arith.constant 0 : index
    %2 = vector.load %arg2[%c0_1, %c0_2] : memref<256x256xbf16, #tpu.memory_space<vmem>>, vector<256x256xbf16>
    %cst = arith.constant dense<0.000000e+00> : vector<64x256xf32>
    %3 = tpu.matmul %1, %2, %cst {dimension_numbers = #tpu.dot_dimension_numbers<[1], [0], [0], [1], [0, 0, 1, 1], [], []>} : vector<64x256xbf16>, vector<256x256xbf16>, vector<64x256xf32> -> vector<64x256xf32>
    %c0_3 = arith.constant 0 : index
    %c0_4 = arith.constant 0 : index
    %4 = vector.load %arg3[%c0_3, %c0_4] : memref<1x256xf32, #tpu.memory_space<vmem>>, vector<1x256xf32>
    %5 = vector.broadcast %4 : vector<1x256xf32> to vector<64x256xf32>
    %6 = arith.addf %3, %5 : vector<64x256xf32>
    %cst_5 = arith.constant 0.000000e+00 : f32
    %7 = vector.broadcast %cst_5 : f32 to vector<64x256xf32>
    %8 = arith.maximumf %6, %7 : vector<64x256xf32>
    %9 = arith.truncf %8 : vector<64x256xf32> to vector<64x256xbf16>
    %c0_6 = arith.constant 0 : index
    %c0_7 = arith.constant 0 : index
    %10 = vector.load %arg4[%c0_6, %c0_7] : memref<256x256xbf16, #tpu.memory_space<vmem>>, vector<256x256xbf16>
    %cst_8 = arith.constant dense<0.000000e+00> : vector<64x256xf32>
    %11 = tpu.matmul %9, %10, %cst_8 {dimension_numbers = #tpu.dot_dimension_numbers<[1], [0], [0], [1], [0, 0, 1, 1], [], []>} : vector<64x256xbf16>, vector<256x256xbf16>, vector<64x256xf32> -> vector<64x256xf32>
    %c0_9 = arith.constant 0 : index
    %c0_10 = arith.constant 0 : index
    %12 = vector.load %arg5[%c0_9, %c0_10] : memref<1x256xf32, #tpu.memory_space<vmem>>, vector<1x256xf32>
    %13 = vector.broadcast %12 : vector<1x256xf32> to vector<64x256xf32>
    %14 = arith.addf %11, %13 : vector<64x256xf32>
    %cst_11 = arith.constant 0.000000e+00 : f32
    %15 = vector.broadcast %cst_11 : f32 to vector<64x256xf32>
    %16 = arith.maximumf %14, %15 : vector<64x256xf32>
    %17 = arith.addf %16, %0 : vector<64x256xf32>
    %c0_12 = arith.constant 0 : index
    %c0_13 = arith.constant 0 : index
    %18 = vector.load %arg6[%c0_12, %c0_13] : memref<64x256xf32, #tpu.memory_space<vmem>>, vector<64x256xf32>
    tpu.vector_store %arg6[%c0_12, %c0_13], %17 {strides = array<i32>} : memref<64x256xf32, #tpu.memory_space<vmem>>, vector<64x256xf32>,
    return
  }
  func.func @transform_0(%arg0: i32) -> (i32, i32) {
    %c0_i32 = arith.constant 0 : i32
    %c0_i32_0 = arith.constant 0 : i32
    return %arg0, %c0_i32 : i32, i32
  }
  func.func @transform_1(%arg0: i32) -> (i32, i32) {
    %c0_i32 = arith.constant 0 : i32
    %c0_i32_0 = arith.constant 0 : i32
    %c0_i32_1 = arith.constant 0 : i32
    return %c0_i32, %c0_i32_0 : i32, i32
  }
  func.func @transform_2(%arg0: i32) -> (i32, i32) {
    %c0_i32 = arith.constant 0 : i32
    %c0_i32_0 = arith.constant 0 : i32
    %c0_i32_1 = arith.constant 0 : i32
    return %c0_i32, %c0_i32_0 : i32, i32
  }
  func.func @transform_3(%arg0: i32) -> (i32, i32) {
    %c0_i32 = arith.constant 0 : i32
    %c0_i32_0 = arith.constant 0 : i32
    %c0_i32_1 = arith.constant 0 : i32
    return %c0_i32, %c0_i32_0 : i32, i32
  }
  func.func @transform_4(%arg0: i32) -> (i32, i32) {
    %c0_i32 = arith.constant 0 : i32
    %c0_i32_0 = arith.constant 0 : i32
    %c0_i32_1 = arith.constant 0 : i32
    return %c0_i32, %c0_i32_0 : i32, i32
  }
  func.func @transform_5(%arg0: i32) -> (i32, i32) {
    %c0_i32 = arith.constant 0 : i32
    %c0_i32_0 = arith.constant 0 : i32
    return %arg0, %c0_i32 : i32, i32
  }
}

</mosaic_0001>

<llo_original>
// kernel: tpu_custom_call.1
$region0: #{tpu_custom_call.1}
  #allocation0 [shape = 'u32[]', space=smem, size = 0x4, offset = 0x4, fixed_abs, tag = 'smem constant byte address 0x4 - core index']
  #allocation1 [shape = 'u32[72,128]{1,0:T(1,128)}', space=vmem, size = 0x9000, scoped, tag = 'internal scratch']
  %s0 = inlined_call_operand.hbm [shape: f32[16,128], index: 0, kind: input, shape index: {}]
  %s1 = inlined_call_operand.hbm [shape: f32[8,128], index: 1, kind: input, shape index: {}]
  %s2 = inlined_call_operand.hbm [shape: f32[16,128], index: 2, kind: output, shape index: {}]
  %s3 = sld [smem:[#allocation0]]
  $region49: #{tpu_custom_call.1} parent=0
    _
  %s5 = ssub.s32 1, %s3
  %s6 = scalar_select 0, %s5, %s3
  $region1: #{tpu_custom_call.1} parent=0
    #allocation2 [shape = 'u8[8192]{0}', space=vmem, size = 0x2000, scoped, tag = 'input window, operand 0']
    #allocation3 [shape = 's32[2]{0}', space=sflag, size = 0x8, scoped, tag = 'scoped memory for tpu_custom_call.1']
    #allocation4 [shape = 's32[2]{0}', space=sflag, size = 0x8, scoped, tag = 'scoped memory for tpu_custom_call.1']
    #allocation5 [shape = 'u8[4096]{0}', space=vmem, size = 0x1000, scoped, tag = 'input window, operand 1, single buffered']
    #allocation6 [shape = 's32[1]{0}', space=sflag, size = 0x4, scoped, tag = 'scoped memory for tpu_custom_call.1']
    #allocation7 [shape = 'u8[8192]{0}', space=vmem, size = 0x2000, scoped, tag = 'output window, operand 0']
    %7 = vsyncpa [#allocation3], 0
    %s8 = scalar_lea.sflag [#allocation3], 1
    %9 = vsyncpa %s8, 0
    %10 = vsyncpa [#allocation6], 0
    %11 = vsyncpa [#allocation4], 0
    %s12 = scalar_lea.sflag [#allocation4], 1
    %13 = vsyncpa %s12, 0
    loop: start=0, step=1, limit=4
    $region2: #{tpu_custom_call.1} parent=1 // loop_pre_header
      _
    $region3: #{tpu_custom_call.1} parent=1 // loop_header
      %s15 = sphi 0, %s19
      %p16 = scmp.ge.s32.totalorder %s15, 4
      %s25 = sphi 0, %s27
      %s28 = sphi 0, %s25
      %s29 = sphi 0, %s28
      %s45 = sphi 0, %s29
      %s49 = sphi 0, %s49
      %s51 = sphi 0, %s49
      %s52 = sphi 0, %s51
      %s66 = sphi 0, %s52
      %s72 = sphi 0, %s74
      %s75 = sphi 0, %s72
      %s76 = sphi 0, %s75
      %s92 = sphi 0, %s76
    $region4: #{tpu_custom_call.1} parent=1 // loop_header_branch
      %18 = sbr.rel (%p16) target = $region8
    $region5: #{tpu_custom_call.1} parent=1 // loop_body
      %s20 = ssub.s32 %s15, 1
      %s21 = ssub.s32 %s15, 2
      %s22 = sadd.s32 %s15, 1
      %s23 = ssub.s32 %s15, %s22
      %p24 = scmp.eq.s32.totalorder %s23, 0
      %s26 = sadd.s32 %s25, 1
      %s27 = scalar_select %p24, %s25, %s26
      %p30 = pneg %p24
      %p31 = scmp.eq.s32.totalorder %s15, 1
      %p32 = por %p30, %p31
      %p33 = scmp.ne.s32.totalorder %s25, %s28
      %p34 = scmp.eq.s32.totalorder %s15, 0
      %p35 = por %p33, %p34
      %p36 = scmp.ne.s32.totalorder %s25, %s28
      %p37 = scmp.eq.s32.totalorder %s20, 1
      %p38 = por %p36, %p37
      %p39 = scmp.ne.s32.totalorder %s28, %s29
      %p40 = scmp.eq.s32.totalorder %s20, 0
      %p41 = por %p39, %p40
      %p42 = scmp.ne.s32.totalorder %s28, %s29
      %p43 = scmp.eq.s32.totalorder %s21, 1
      %p44 = por %p42, %p43
      %p46 = scmp.ne.s32.totalorder %s29, %s45
      %p47 = scmp.eq.s32.totalorder %s21, 0
      %p48 = por %p46, %p47
      %s50 = sadd.s32 %s49, 1
      %p53 = scmp.eq.s32.totalorder %s15, 1
      %p54 = scmp.ne.s32.totalorder %s49, %s51
      %p55 = scmp.eq.s32.totalorder %s15, 0
      %p56 = por %p54, %p55
      %p57 = scmp.ne.s32.totalorder %s49, %s51
      %p58 = scmp.eq.s32.totalorder %s20, 1
      %p59 = por %p57, %p58
      %p60 = scmp.ne.s32.totalorder %s51, %s52
      %p61 = scmp.eq.s32.totalorder %s20, 0
      %p62 = por %p60, %p61
      %p63 = scmp.ne.s32.totalorder %s51, %s52
      %p64 = scmp.eq.s32.totalorder %s21, 1
      %p65 = por %p63, %p64
      %p67 = scmp.ne.s32.totalorder %s52, %s66
      %p68 = scmp.eq.s32.totalorder %s21, 0
      %p69 = por %p67, %p68
      %s70 = ssub.s32 %s15, %s22
      %p71 = scmp.eq.s32.totalorder %s70, 0
      %s73 = sadd.s32 %s72, 1
      %s74 = scalar_select %p71, %s72, %s73
      %p77 = pneg %p71
      %p78 = scmp.eq.s32.totalorder %s15, 1
      %p79 = por %p77, %p78
      %p80 = scmp.ne.s32.totalorder %s72, %s75
      %p81 = scmp.eq.s32.totalorder %s15, 0
      %p82 = por %p80, %p81
      %p83 = scmp.ne.s32.totalorder %s72, %s75
      %p84 = scmp.eq.s32.totalorder %s20, 1
      %p85 = por %p83, %p84
      %p86 = scmp.ne.s32.totalorder %s75, %s76
      %p87 = scmp.eq.s32.totalorder %s20, 0
      %p88 = por %p86, %p87
      %p89 = scmp.ne.s32.totalorder %s75, %s76
      %p90 = scmp.eq.s32.totalorder %s21, 1
      %p91 = por %p89, %p90
      %p93 = scmp.ne.s32.totalorder %s76, %s92
      %p94 = scmp.eq.s32.totalorder %s21, 0
      %p95 = por %p93, %p94
      %p96 = scmp.le.s32.totalorder 1, %s15
      %p97 = scmp.lt.s32.totalorder %s15, 3
      %p98 = pnand %p96, %p97
      %p99 = pneg %p98
      // Predicated region
      $region9: #{tpu_custom_call.1} parent=5 // pred_check
        _
      $region10: #{tpu_custom_call.1} parent=5 // pred_check_branch
        %101 = sbr.rel (%p98) target = $region12
      $region11: #{tpu_custom_call.1} parent=5 // pred_region
        %s102 = ssub.s32 %s15, 1
        // Predicated region
        $region13: #{tpu_custom_call.1} parent=11 // pred_check
          %p103 = pneg %p62
        $region14: #{tpu_custom_call.1} parent=11 // pred_check_branch
          %105 = sbr.rel (%p103) target = $region16
        $region15: #{tpu_custom_call.1} parent=11 // pred_region
          %107 = vsyncadd [#allocation6], 0
          %s109 = sshll.u32 %s1, 4
          %s110 = int_to_ptr.hbm [resolvable:$true] %s109
          %s111 = sshll.u32 [#allocation5], 4
          %s112 = int_to_ptr.vmem [resolvable:$true] %s111
          %114 = dma.hbm_to_vmem [thread:$0]  %s110, 128, %s112, [#allocation6]
        $region16: #{tpu_custom_call.1} parent=11 // pred_fallthru
          _
      $region12: #{tpu_custom_call.1} parent=5 // pred_fallthru
        _
      %p115 = scmp.lt.s32.totalorder %s15, 2
      // Predicated region
      $region17: #{tpu_custom_call.1} parent=5 // pred_check
        %p116 = pneg %p115
      $region18: #{tpu_custom_call.1} parent=5 // pred_check_branch
        %118 = sbr.rel (%p116) target = $region20
      $region19: #{tpu_custom_call.1} parent=5 // pred_region
        // Predicated region
        $region21: #{tpu_custom_call.1} parent=19 // pred_check
          %p119 = pneg %p35
        $region22: #{tpu_custom_call.1} parent=19 // pred_check_branch
          %121 = sbr.rel (%p119) target = $region24
        $region23: #{tpu_custom_call.1} parent=19 // pred_region
          %s122 = sand.u32 %s25, 1
          %s123 = scalar_lea.sflag [#allocation3], %s122
          %s124 = sand.u32 %s25, 1
          %s125 = smul.addr %s124, 8
          %s126 = scalar_lea.vmem [#allocation2], %s125
          %128 = vsyncadd %s123, 0
          %s129 = smul.addr %s15, 8
          %s130 = scalar_lea.hbm %s0, %s129
          %s132 = sshll.u32 %s130, 4
          %s133 = int_to_ptr.hbm [resolvable:$true] %s132
          %s134 = sshll.u32 %s126, 4
          %s135 = int_to_ptr.vmem [resolvable:$true] %s134
          %137 = dma.hbm_to_vmem [thread:$0]  %s133, 128, %s135, %s123
        $region24: #{tpu_custom_call.1} parent=19 // pred_fallthru
          _
      $region20: #{tpu_custom_call.1} parent=5 // pred_fallthru
        _
      %p138 = scmp.le.s32.totalorder 1, %s15
      %p139 = scmp.lt.s32.totalorder %s15, 3
      %p140 = pnand %p138, %p139
      %p141 = pneg %p140
      // Predicated region
      $region25: #{tpu_custom_call.1} parent=5 // pred_check
        _
      $region26: #{tpu_custom_call.1} parent=5 // pred_check_branch
        %143 = sbr.rel (%p140) target = $region28
      $region27: #{tpu_custom_call.1} parent=5 // pred_region
        %s144 = ssub.s32 %s15, 1
        %s145 = sand.u32 %s28, 1
        %s146 = scalar_lea.sflag [#allocation3], %s145
        %s147 = sand.u32 %s28, 1
        %s148 = smul.addr %s147, 8
        %s149 = scalar_lea.vmem [#allocation2], %s148
        // Predicated region
        $region29: #{tpu_custom_call.1} parent=27 // pred_check
          %p150 = pneg %p41
        $region30: #{tpu_custom_call.1} parent=27 // pred_check_branch
          %152 = sbr.rel (%p150) target = $region32
        $region31: #{tpu_custom_call.1} parent=27 // pred_region
          %154 = dma.done %s146, 128
        $region32: #{tpu_custom_call.1} parent=27 // pred_fallthru
          _
        // Predicated region
        $region33: #{tpu_custom_call.1} parent=27 // pred_check
          %p155 = pneg %p62
        $region34: #{tpu_custom_call.1} parent=27 // pred_check_branch
          %157 = sbr.rel (%p155) target = $region36
        $region35: #{tpu_custom_call.1} parent=27 // pred_region
          %159 = dma.done [#allocation6], 128
        $region36: #{tpu_custom_call.1} parent=27 // pred_fallthru
          _
        %s160 = sand.u32 %s28, 1
        %s161 = scalar_lea.sflag [#allocation3], %s160
        %s162 = sand.u32 %s28, 1
        %s163 = smul.addr %s162, 8
        %s164 = scalar_lea.vmem [#allocation2], %s163
        %p165 = pneg %p41
        %p166 = pneg %p38
        %p167 = pneg %p62
        %p168 = pneg %p59
        %p169 = pneg %p88
        %p170 = pneg %p85
        %s171 = sand.u32 %s75, 1
        %s172 = scalar_lea.sflag [#allocation4], %s171
        %s173 = sand.u32 %s75, 1
        %s174 = smul.addr %s173, 8
        %s175 = scalar_lea.vmem [#allocation7], %s174
        %v176 = vld [vmem:[%s149] sm:$0xff]
        %v177 = vld [vmem:[#allocation5] sm:$0xff]
        %v178 = vadd.f32 %v176, %v177
        %179 = vst [vmem:[%s175] sm:$0xff] %v178
        %s180 = sand.u32 %s75, 1
        %s181 = scalar_lea.sflag [#allocation4], %s180
        %s182 = sand.u32 %s75, 1
        %s183 = smul.addr %s182, 8
        %s184 = scalar_lea.vmem [#allocation7], %s183
        // Predicated region
        $region37: #{tpu_custom_call.1} parent=27 // pred_check
          %p185 = pneg %p85
        $region38: #{tpu_custom_call.1} parent=27 // pred_check_branch
          %187 = sbr.rel (%p185) target = $region40
        $region39: #{tpu_custom_call.1} parent=27 // pred_region
          %189 = vsyncadd %s181, 0
          %s190 = smul.addr %s20, 8
          %s191 = scalar_lea.hbm %s2, %s190
          %s193 = sshll.u32 %s184, 4
          %s194 = int_to_ptr.vmem [resolvable:$true] %s193
          %s195 = sshll.u32 %s191, 4
          %s196 = int_to_ptr.hbm [resolvable:$true] %s195
          %198 = dma.vmem_to_hbm [thread:$0]  %s194, 128, %s196, %s181
        $region40: #{tpu_custom_call.1} parent=27 // pred_fallthru
          _
      $region28: #{tpu_custom_call.1} parent=5 // pred_fallthru
        _
      %p199 = scmp.le.s32.totalorder 2, %s15
      // Predicated region
      $region41: #{tpu_custom_call.1} parent=5 // pred_check
        %p200 = pneg %p199
      $region42: #{tpu_custom_call.1} parent=5 // pred_check_branch
        %202 = sbr.rel (%p200) target = $region44
      $region43: #{tpu_custom_call.1} parent=5 // pred_region
        %s203 = ssub.s32 %s15, 2
        // Predicated region
        $region45: #{tpu_custom_call.1} parent=43 // pred_check
          %p204 = pneg %p91
        $region46: #{tpu_custom_call.1} parent=43 // pred_check_branch
          %206 = sbr.rel (%p204) target = $region48
        $region47: #{tpu_custom_call.1} parent=43 // pred_region
          %s207 = sand.u32 %s76, 1
          %s208 = scalar_lea.sflag [#allocation4], %s207
          %s209 = sand.u32 %s76, 1
          %s210 = smul.addr %s209, 8
          %s211 = scalar_lea.vmem [#allocation7], %s210
          %213 = dma.done %s208, 128
        $region48: #{tpu_custom_call.1} parent=43 // pred_fallthru
          _
      $region44: #{tpu_custom_call.1} parent=5 // pred_fallthru
        _
    $region6: #{tpu_custom_call.1} parent=1 // loop_footer
      %s19 = sadd.s32 1, %s15
    $region7: #{tpu_custom_call.1} parent=1 // loop_footer_branch
      %14 = sbr.rel target = $region3
    $region8: #{tpu_custom_call.1} parent=1 // loop_exit
      _
    %214 = vsyncpa [#allocation3], 1
    %s215 = scalar_lea.sflag [#allocation3], 1
    %216 = vsyncpa %s215, 1
    %217 = vsyncpa [#allocation6], 1
    %218 = vsyncpa [#allocation4], 1
    %s219 = scalar_lea.sflag [#allocation4], 1
    %220 = vsyncpa %s219, 1

// kernel: tpu_custom_call.1
$region0: #{tpu_custom_call.1}
  #allocation0 [shape = 'u32[]', space=smem, size = 0x4, offset = 0x4, fixed_abs, tag = 'smem constant byte address 0x4 - core index']
  #allocation1 [shape = 'u32[72,128]{1,0:T(1,128)}', space=vmem, size = 0x9000, scoped, tag = 'internal scratch']
  %s0 = inlined_call_operand.hbm [shape: f32[256,256], index: 0, kind: input, shape index: {}]
  %s1 = inlined_call_operand.hbm [shape: bf16[256,256], index: 1, kind: input, shape index: {}]
  %s2 = inlined_call_operand.hbm [shape: f32[1,256], index: 2, kind: input, shape index: {}]
  %s3 = inlined_call_operand.hbm [shape: bf16[256,256], index: 3, kind: input, shape index: {}]
  %s4 = inlined_call_operand.vmem [shape: f32[1,256], index: 4, kind: input, shape index: {}]
  %s5 = inlined_call_operand.hbm [shape: f32[256,256], index: 5, kind: output, shape index: {}]
  %s6 = sld [smem:[#allocation0]]
  $region69: #{tpu_custom_call.1} parent=0
    _
  %s8 = ssub.s32 1, %s6
  %s9 = scalar_select 0, %s8, %s6
  $region1: #{tpu_custom_call.1} parent=0
    #allocation2 [shape = 'u8[131072]{0}', space=vmem, size = 0x20000, scoped, tag = 'input window, operand 0']
    #allocation3 [shape = 's32[2]{0}', space=sflag, size = 0x8, scoped, tag = 'scoped memory for tpu_custom_call.1']
    #allocation4 [shape = 's32[2]{0}', space=sflag, size = 0x8, scoped, tag = 'scoped memory for tpu_custom_call.1']
    #allocation5 [shape = 'u8[131072]{0}', space=vmem, size = 0x20000, scoped, tag = 'input window, operand 1, single buffered']
    #allocation6 [shape = 's32[1]{0}', space=sflag, size = 0x4, scoped, tag = 'scoped memory for tpu_custom_call.1']
    #allocation7 [shape = 'u8[1024]{0}', space=vmem, size = 0x400, scoped, tag = 'input window, operand 2, single buffered']
    #allocation8 [shape = 'u8[131072]{0}', space=vmem, size = 0x20000, scoped, tag = 'input window, operand 3, single buffered']
    #allocation9 [shape = 's32[1]{0}', space=sflag, size = 0x4, scoped, tag = 'scoped memory for tpu_custom_call.1']
    #allocation10 [shape = 'u8[131072]{0}', space=vmem, size = 0x20000, scoped, tag = 'output window, operand 0']
    %10 = vsyncpa [#allocation3], 0
    %s11 = scalar_lea.sflag [#allocation3], 1
    %12 = vsyncpa %s11, 0
    %13 = vsyncpa [#allocation6], 0
    %14 = vsyncpa [#allocation9], 0
    %15 = vsyncpa [#allocation4], 0
    %s16 = scalar_lea.sflag [#allocation4], 1
    %17 = vsyncpa %s16, 0
    loop: start=0, step=1, limit=6
    $region2: #{tpu_custom_call.1} parent=1 // loop_pre_header
      _
    $region3: #{tpu_custom_call.1} parent=1 // loop_header
      %s19 = sphi 0, %s23
      %p20 = scmp.ge.s32.totalorder %s19, 6
      %s29 = sphi 0, %s31
      %s32 = sphi 0, %s29
      %s33 = sphi 0, %s32
      %s49 = sphi 0, %s33
      %s53 = sphi 0, %s53
      %s55 = sphi 0, %s53
      %s56 = sphi 0, %s55
      %s70 = sphi 0, %s56
      %s74 = sphi 0, %s74
      %s76 = sphi 0, %s74
      %s77 = sphi 0, %s76
      %s91 = sphi 0, %s77
      %s95 = sphi 0, %s95
      %s97 = sphi 0, %s95
      %s98 = sphi 0, %s97
      %s112 = sphi 0, %s98
      %s116 = sphi 0, %s116
      %s118 = sphi 0, %s116
      %s119 = sphi 0, %s118
      %s133 = sphi 0, %s119
      %s139 = sphi 0, %s141
      %s142 = sphi 0, %s139
      %s143 = sphi 0, %s142
      %s159 = sphi 0, %s143
    $region4: #{tpu_custom_call.1} parent=1 // loop_header_branch
      %22 = sbr.rel (%p20) target = $region8
    $region5: #{tpu_custom_call.1} parent=1 // loop_body
      %s24 = ssub.s32 %s19, 1
      %s25 = ssub.s32 %s19, 2
      %s26 = sadd.s32 %s19, 1
      %s27 = ssub.s32 %s19, %s26
      %p28 = scmp.eq.s32.totalorder %s27, 0
      %s30 = sadd.s32 %s29, 1
      %s31 = scalar_select %p28, %s29, %s30
      %p34 = pneg %p28
      %p35 = scmp.eq.s32.totalorder %s19, 3
      %p36 = por %p34, %p35
      %p37 = scmp.ne.s32.totalorder %s29, %s32
      %p38 = scmp.eq.s32.totalorder %s19, 0
      %p39 = por %p37, %p38
      %p40 = scmp.ne.s32.totalorder %s29, %s32
      %p41 = scmp.eq.s32.totalorder %s24, 3
      %p42 = por %p40, %p41
      %p43 = scmp.ne.s32.totalorder %s32, %s33
      %p44 = scmp.eq.s32.totalorder %s24, 0
      %p45 = por %p43, %p44
      %p46 = scmp.ne.s32.totalorder %s32, %s33
      %p47 = scmp.eq.s32.totalorder %s25, 3
      %p48 = por %p46, %p47
      %p50 = scmp.ne.s32.totalorder %s33, %s49
      %p51 = scmp.eq.s32.totalorder %s25, 0
      %p52 = por %p50, %p51
      %s54 = sadd.s32 %s53, 1
      %p57 = scmp.eq.s32.totalorder %s19, 3
      %p58 = scmp.ne.s32.totalorder %s53, %s55
      %p59 = scmp.eq.s32.totalorder %s19, 0
      %p60 = por %p58, %p59
      %p61 = scmp.ne.s32.totalorder %s53, %s55
      %p62 = scmp.eq.s32.totalorder %s24, 3
      %p63 = por %p61, %p62
      %p64 = scmp.ne.s32.totalorder %s55, %s56
      %p65 = scmp.eq.s32.totalorder %s24, 0
      %p66 = por %p64, %p65
      %p67 = scmp.ne.s32.totalorder %s55, %s56
      %p68 = scmp.eq.s32.totalorder %s25, 3
      %p69 = por %p67, %p68
      %p71 = scmp.ne.s32.totalorder %s56, %s70
      %p72 = scmp.eq.s32.totalorder %s25, 0
      %p73 = por %p71, %p72
      %s75 = sadd.s32 %s74, 1
      %p78 = scmp.eq.s32.totalorder %s19, 3
      %p79 = scmp.ne.s32.totalorder %s74, %s76
      %p80 = scmp.eq.s32.totalorder %s19, 0
      %p81 = por %p79, %p80
      %p82 = scmp.ne.s32.totalorder %s74, %s76
      %p83 = scmp.eq.s32.totalorder %s24, 3
      %p84 = por %p82, %p83
      %p85 = scmp.ne.s32.totalorder %s76, %s77
      %p86 = scmp.eq.s32.totalorder %s24, 0
      %p87 = por %p85, %p86
      %p88 = scmp.ne.s32.totalorder %s76, %s77
      %p89 = scmp.eq.s32.totalorder %s25, 3
      %p90 = por %p88, %p89
      %p92 = scmp.ne.s32.totalorder %s77, %s91
      %p93 = scmp.eq.s32.totalorder %s25, 0
      %p94 = por %p92, %p93
      %s96 = sadd.s32 %s95, 1
      %p99 = scmp.eq.s32.totalorder %s19, 3
      %p100 = scmp.ne.s32.totalorder %s95, %s97
      %p101 = scmp.eq.s32.totalorder %s19, 0
      %p102 = por %p100, %p101
      %p103 = scmp.ne.s32.totalorder %s95, %s97
      %p104 = scmp.eq.s32.totalorder %s24, 3
      %p105 = por %p103, %p104
      %p106 = scmp.ne.s32.totalorder %s97, %s98
      %p107 = scmp.eq.s32.totalorder %s24, 0
      %p108 = por %p106, %p107
      %p109 = scmp.ne.s32.totalorder %s97, %s98
      %p110 = scmp.eq.s32.totalorder %s25, 3
      %p111 = por %p109, %p110
      %p113 = scmp.ne.s32.totalorder %s98, %s112
      %p114 = scmp.eq.s32.totalorder %s25, 0
      %p115 = por %p113, %p114
      %s117 = sadd.s32 %s116, 1
      %p120 = scmp.eq.s32.totalorder %s19, 3
      %p121 = scmp.ne.s32.totalorder %s116, %s118
      %p122 = scmp.eq.s32.totalorder %s19, 0
      %p123 = por %p121, %p122
      %p124 = scmp.ne.s32.totalorder %s116, %s118
      %p125 = scmp.eq.s32.totalorder %s24, 3
      %p126 = por %p124, %p125
      %p127 = scmp.ne.s32.totalorder %s118, %s119
      %p128 = scmp.eq.s32.totalorder %s24, 0
      %p129 = por %p127, %p128
      %p130 = scmp.ne.s32.totalorder %s118, %s119
      %p131 = scmp.eq.s32.totalorder %s25, 3
      %p132 = por %p130, %p131
      %p134 = scmp.ne.s32.totalorder %s119, %s133
      %p135 = scmp.eq.s32.totalorder %s25, 0
      %p136 = por %p134, %p135
      %s137 = ssub.s32 %s19, %s26
      %p138 = scmp.eq.s32.totalorder %s137, 0
      %s140 = sadd.s32 %s139, 1
      %s141 = scalar_select %p138, %s139, %s140
      %p144 = pneg %p138
      %p145 = scmp.eq.s32.totalorder %s19, 3
      %p146 = por %p144, %p145
      %p147 = scmp.ne.s32.totalorder %s139, %s142
      %p148 = scmp.eq.s32.totalorder %s19, 0
      %p149 = por %p147, %p148
      %p150 = scmp.ne.s32.totalorder %s139, %s142
      %p151 = scmp.eq.s32.totalorder %s24, 3
      %p152 = por %p150, %p151
      %p153 = scmp.ne.s32.totalorder %s142, %s143
      %p154 = scmp.eq.s32.totalorder %s24, 0
      %p155 = por %p153, %p154
      %p156 = scmp.ne.s32.totalorder %s142, %s143
      %p157 = scmp.eq.s32.totalorder %s25, 3
      %p158 = por %p156, %p157
      %p160 = scmp.ne.s32.totalorder %s143, %s159
      %p161 = scmp.eq.s32.totalorder %s25, 0
      %p162 = por %p160, %p161
      %p163 = scmp.le.s32.totalorder 1, %s19
      %p164 = scmp.lt.s32.totalorder %s19, 5
      %p165 = pnand %p163, %p164
      %p166 = pneg %p165
      // Predicated region
      $region9: #{tpu_custom_call.1} parent=5 // pred_check
        _
      $region10: #{tpu_custom_call.1} parent=5 // pred_check_branch
        %168 = sbr.rel (%p165) target = $region12
      $region11: #{tpu_custom_call.1} parent=5 // pred_region
        %s169 = ssub.s32 %s19, 1
        // Predicated region
        $region13: #{tpu_custom_call.1} parent=11 // pred_check
          %p170 = pneg %p66
        $region14: #{tpu_custom_call.1} parent=11 // pred_check_branch
          %172 = sbr.rel (%p170) target = $region16
        $region15: #{tpu_custom_call.1} parent=11 // pred_region
          %174 = vsyncadd [#allocation6], 0
          %s175 = sshll.u32 %s1, 4
          %s176 = int_to_ptr.hbm [resolvable:$true] %s175
          %s177 = sshll.u32 [#allocation5], 4
          %s178 = int_to_ptr.vmem [resolvable:$true] %s177
          %183 = dma.hbm_to_vmem [thread:$0]  %s176, 4096, %s178, [#allocation6], 128, 128, 8
        $region16: #{tpu_custom_call.1} parent=11 // pred_fallthru
          _
        // Predicated region
        $region17: #{tpu_custom_call.1} parent=11 // pred_check
          %p184 = pneg %p87
        $region18: #{tpu_custom_call.1} parent=11 // pred_check_branch
          %186 = sbr.rel (%p184) target = $region20
        $region19: #{tpu_custom_call.1} parent=11 // pred_region
          %188 = vsyncadd [#allocation6], 0
          %s190 = sshll.u32 %s2, 4
          %s191 = int_to_ptr.hbm [resolvable:$true] %s190
          %s192 = sshll.u32 [#allocation7], 4
          %s193 = int_to_ptr.vmem [resolvable:$true] %s192
          %195 = dma.hbm_to_vmem [thread:$0]  %s191, 32, %s193, [#allocation6]
        $region20: #{tpu_custom_call.1} parent=11 // pred_fallthru
          _
        // Predicated region
        $region21: #{tpu_custom_call.1} parent=11 // pred_check
          %p196 = pneg %p108
        $region22: #{tpu_custom_call.1} parent=11 // pred_check_branch
          %198 = sbr.rel (%p196) target = $region24
        $region23: #{tpu_custom_call.1} parent=11 // pred_region
          %200 = vsyncadd [#allocation9], 0
          %s201 = sshll.u32 %s3, 4
          %s202 = int_to_ptr.hbm [resolvable:$true] %s201
          %s203 = sshll.u32 [#allocation8], 4
          %s204 = int_to_ptr.vmem [resolvable:$true] %s203
          %209 = dma.hbm_to_vmem [thread:$0]  %s202, 4096, %s204, [#allocation9], 128, 128, 8
        $region24: #{tpu_custom_call.1} parent=11 // pred_fallthru
          _
        // Predicated region
        $region25: #{tpu_custom_call.1} parent=11 // pred_check
          %p210 = pneg %p129
        $region26: #{tpu_custom_call.1} parent=11 // pred_check_branch
          %212 = sbr.rel (%p210) target = $region28
        $region27: #{tpu_custom_call.1} parent=11 // pred_region
          _
        $region28: #{tpu_custom_call.1} parent=11 // pred_fallthru
          _
      $region12: #{tpu_custom_call.1} parent=5 // pred_fallthru
        _
      %p213 = scmp.lt.s32.totalorder %s19, 4
      // Predicated region
      $region29: #{tpu_custom_call.1} parent=5 // pred_check
        %p214 = pneg %p213
      $region30: #{tpu_custom_call.1} parent=5 // pred_check_branch
        %216 = sbr.rel (%p214) target = $region32
      $region31: #{tpu_custom_call.1} parent=5 // pred_region
        // Predicated region
        $region33: #{tpu_custom_call.1} parent=31 // pred_check
          %p217 = pneg %p39
        $region34: #{tpu_custom_call.1} parent=31 // pred_check_branch
          %219 = sbr.rel (%p217) target = $region36
        $region35: #{tpu_custom_call.1} parent=31 // pred_region
          %s220 = sand.u32 %s29, 1
          %s221 = scalar_lea.sflag [#allocation3], %s220
          %s222 = sand.u32 %s29, 1
          %s223 = smul.addr %s222, 128
          %s224 = scalar_lea.vmem [#allocation2], %s223
          %s225 = smul.u32 8, %s19
          %227 = vsyncadd %s221, 0
          %s228 = smul.addr %s225, 2
          %s229 = smul.addr %s228, 8
          %s230 = scalar_lea.hbm %s0, %s229
          %s231 = sshll.u32 %s230, 4
          %s232 = int_to_ptr.hbm [resolvable:$true] %s231
          %s233 = sshll.u32 %s224, 4
          %s234 = int_to_ptr.vmem [resolvable:$true] %s233
          %239 = dma.hbm_to_vmem [thread:$0]  %s232, 2048, %s234, %s221, 256, 256, 16
        $region36: #{tpu_custom_call.1} parent=31 // pred_fallthru
          _
      $region32: #{tpu_custom_call.1} parent=5 // pred_fallthru
        _
      %p240 = scmp.le.s32.totalorder 1, %s19
      %p241 = scmp.lt.s32.totalorder %s19, 5
      %p242 = pnand %p240, %p241
      %p243 = pneg %p242
      // Predicated region
      $region37: #{tpu_custom_call.1} parent=5 // pred_check
        _
      $region38: #{tpu_custom_call.1} parent=5 // pred_check_branch
        %245 = sbr.rel (%p242) target = $region40
      $region39: #{tpu_custom_call.1} parent=5 // pred_region
        %s246 = ssub.s32 %s19, 1
        %s247 = sand.u32 %s32, 1
        %s248 = scalar_lea.sflag [#allocation3], %s247
        %s249 = sand.u32 %s32, 1
        %s250 = smul.addr %s249, 128
        %s251 = scalar_lea.vmem [#allocation2], %s250
        // Predicated region
        $region41: #{tpu_custom_call.1} parent=39 // pred_check
          %p252 = pneg %p45
        $region42: #{tpu_custom_call.1} parent=39 // pred_check_branch
          %254 = sbr.rel (%p252) target = $region44
        $region43: #{tpu_custom_call.1} parent=39 // pred_region
          %256 = dma.done %s248, 2048
        $region44: #{tpu_custom_call.1} parent=39 // pred_fallthru
          _
        // Predicated region
        $region45: #{tpu_custom_call.1} parent=39 // pred_check
          %p257 = pneg %p66
        $region46: #{tpu_custom_call.1} parent=39 // pred_check_branch
          %259 = sbr.rel (%p257) target = $region48
        $region47: #{tpu_custom_call.1} parent=39 // pred_region
          %261 = dma.done [#allocation6], 4096
        $region48: #{tpu_custom_call.1} parent=39 // pred_fallthru
          _
        // Predicated region
        $region49: #{tpu_custom_call.1} parent=39 // pred_check
          %p262 = pneg %p87
        $region50: #{tpu_custom_call.1} parent=39 // pred_check_branch
          %264 = sbr.rel (%p262) target = $region52
        $region51: #{tpu_custom_call.1} parent=39 // pred_region
          %266 = dma.done [#allocation6], 32
        $region52: #{tpu_custom_call.1} parent=39 // pred_fallthru
          _
        // Predicated region
        $region53: #{tpu_custom_call.1} parent=39 // pred_check
          %p267 = pneg %p108
        $region54: #{tpu_custom_call.1} parent=39 // pred_check_branch
          %269 = sbr.rel (%p267) target = $region56
        $region55: #{tpu_custom_call.1} parent=39 // pred_region
          %271 = dma.done [#allocation9], 4096
        $region56: #{tpu_custom_call.1} parent=39 // pred_fallthru
          _
        %s272 = sand.u32 %s32, 1
        %s273 = scalar_lea.sflag [#allocation3], %s272
        %s274 = sand.u32 %s32, 1
        %s275 = smul.addr %s274, 128
        %s276 = scalar_lea.vmem [#allocation2], %s275
        %p277 = pneg %p45
        %p278 = pneg %p42
        %p279 = pneg %p66
        %p280 = pneg %p63
        %p281 = pneg %p87
        %p282 = pneg %p84
        %p283 = pneg %p108
        %p284 = pneg %p105
        %p285 = pneg %p129
        %p286 = pneg %p126
        %p287 = pneg %p155
        %p288 = pneg %p152
        %s289 = sand.u32 %s142, 1
        %s290 = scalar_lea.sflag [#allocation4], %s289
        %s291 = sand.u32 %s142, 1
        %s292 = smul.addr %s291, 128
        %s293 = scalar_lea.vmem [#allocation10], %s292
        %s294 = smul.u32 8, %s24
        %s295 = smul.u32 8, %s24
        %v296 = vld [vmem:[%s251] sm:$0xff]
        %v297 = vld [vmem:[%s251 + $0x8] sm:$0xff]
        %v298 = vld [vmem:[%s251 + $0x10] sm:$0xff]
        %v299 = vld [vmem:[%s251 + $0x18] sm:$0xff]
        %v300 = vld [vmem:[%s251 + $0x20] sm:$0xff]
        %v301 = vld [vmem:[%s251 + $0x28] sm:$0xff]
        %v302 = vld [vmem:[%s251 + $0x30] sm:$0xff]
        %v303 = vld [vmem:[%s251 + $0x38] sm:$0xff]
        %v304 = vld [vmem:[%s251 + $0x40] sm:$0xff]
        %v305 = vld [vmem:[%s251 + $0x48] sm:$0xff]
        %v306 = vld [vmem:[%s251 + $0x50] sm:$0xff]
        %v307 = vld [vmem:[%s251 + $0x58] sm:$0xff]
        %v308 = vld [vmem:[%s251 + $0x60] sm:$0xff]
        %v309 = vld [vmem:[%s251 + $0x68] sm:$0xff]
        %v310 = vld [vmem:[%s251 + $0x70] sm:$0xff]
        %v311 = vld [vmem:[%s251 + $0x78] sm:$0xff]
        %v312 = vpack.c.bf16 %v298, %v296
        %v313 = vpack.c.bf16 %v299, %v297
        %v314 = vpack.c.bf16 %v302, %v300
        %v315 = vpack.c.bf16 %v303, %v301
        %v316 = vpack.c.bf16 %v306, %v304
        %v317 = vpack.c.bf16 %v307, %v305
        %v318 = vpack.c.bf16 %v310, %v308
        %v319 = vpack.c.bf16 %v311, %v309
        %v320 = vld [vmem:[#allocation5] sm:$0xff]
        %v321 = vld [vmem:[#allocation5 + $0x8] sm:$0xff]
        %v322 = vld [vmem:[#allocation5 + $0x10] sm:$0xff]
        %v323 = vld [vmem:[#allocation5 + $0x18] sm:$0xff]
        %v324 = vld [vmem:[#allocation5 + $0x20] sm:$0xff]
        %v325 = vld [vmem:[#allocation5 + $0x28] sm:$0xff]
        %v326 = vld [vmem:[#allocation5 + $0x30] sm:$0xff]
        %v327 = vld [vmem:[#allocation5 + $0x38] sm:$0xff]
        %v328 = vld [vmem:[#allocation5 + $0x40] sm:$0xff]
        %v329 = vld [vmem:[#allocation5 + $0x48] sm:$0xff]
        %v330 = vld [vmem:[#allocation5 + $0x50] sm:$0xff]
        %v331 = vld [vmem:[#allocation5 + $0x58] sm:$0xff]
        %v332 = vld [vmem:[#allocation5 + $0x60] sm:$0xff]
        %v333 = vld [vmem:[#allocation5 + $0x68] sm:$0xff]
        %v334 = vld [vmem:[#allocation5 + $0x70] sm:$0xff]
        %v335 = vld [vmem:[#allocation5 + $0x78] sm:$0xff]
        %v336 = vld [vmem:[#allocation5 + $0x80] sm:$0xff]
        %v337 = vld [vmem:[#allocation5 + $0x88] sm:$0xff]
        %v338 = vld [vmem:[#allocation5 + $0x90] sm:$0xff]
        %v339 = vld [vmem:[#allocation5 + $0x98] sm:$0xff]
        %v340 = vld [vmem:[#allocation5 + $0xa0] sm:$0xff]
        %v341 = vld [vmem:[#allocation5 + $0xa8] sm:$0xff]
        %v342 = vld [vmem:[#allocation5 + $0xb0] sm:$0xff]
        %v343 = vld [vmem:[#allocation5 + $0xb8] sm:$0xff]
        %v344 = vld [vmem:[#allocation5 + $0xc0] sm:$0xff]
        %v345 = vld [vmem:[#allocation5 + $0xc8] sm:$0xff]
        %v346 = vld [vmem:[#allocation5 + $0xd0] sm:$0xff]
        %v347 = vld [vmem:[#allocation5 + $0xd8] sm:$0xff]
        %v348 = vld [vmem:[#allocation5 + $0xe0] sm:$0xff]
        %v349 = vld [vmem:[#allocation5 + $0xe8] sm:$0xff]
        %v350 = vld [vmem:[#allocation5 + $0xf0] sm:$0xff]
        %v351 = vld [vmem:[#allocation5 + $0xf8] sm:$0xff]
        %v352 = vld [vmem:[#allocation7] sm:$0x3]
        %v354 = vperm.slane %v352, 0
        %v355 = vperm.slane %v352, 1
        %v390 = vunpack.c.l.b16 %v320
        %v391 = vunpack.c.h.b16 %v320
        %v392 = vunpack.c.l.b16 %v321
        %v393 = vunpack.c.h.b16 %v321
        %v394 = vunpack.c.l.b16 %v322
        %v395 = vunpack.c.h.b16 %v322
        %v396 = vunpack.c.l.b16 %v323
        %v397 = vunpack.c.h.b16 %v323
        %v398 = vunpack.c.l.b16 %v324
        %v399 = vunpack.c.h.b16 %v324
        %v400 = vunpack.c.l.b16 %v325
        %v401 = vunpack.c.h.b16 %v325
        %v402 = vunpack.c.l.b16 %v326
        %v403 = vunpack.c.h.b16 %v326
        %v404 = vunpack.c.l.b16 %v327
        %v405 = vunpack.c.h.b16 %v327
        %v406 = vunpack.c.l.b16 %v328
        %v407 = vunpack.c.h.b16 %v328
        %v408 = vunpack.c.l.b16 %v329
        %v409 = vunpack.c.h.b16 %v329
        %v410 = vunpack.c.l.b16 %v330
        %v411 = vunpack.c.h.b16 %v330
        %v412 = vunpack.c.l.b16 %v331
        %v413 = vunpack.c.h.b16 %v331
        %v414 = vunpack.c.l.b16 %v332
        %v415 = vunpack.c.h.b16 %v332
        %v416 = vunpack.c.l.b16 %v333
        %v417 = vunpack.c.h.b16 %v333
        %v418 = vunpack.c.l.b16 %v334
        %v419 = vunpack.c.h.b16 %v334
        %v420 = vunpack.c.l.b16 %v335
        %v421 = vunpack.c.h.b16 %v335
        %v422 = vunpack.c.l.b16 %v336
        %v423 = vunpack.c.h.b16 %v336
        %v424 = vunpack.c.l.b16 %v337
        %v425 = vunpack.c.h.b16 %v337
        %v426 = vunpack.c.l.b16 %v338
        %v427 = vunpack.c.h.b16 %v338
        %v428 = vunpack.c.l.b16 %v339
        %v429 = vunpack.c.h.b16 %v339
        %v430 = vunpack.c.l.b16 %v340
        %v431 = vunpack.c.h.b16 %v340
        %v432 = vunpack.c.l.b16 %v341
        %v433 = vunpack.c.h.b16 %v341
        %v434 = vunpack.c.l.b16 %v342
        %v435 = vunpack.c.h.b16 %v342
        %v436 = vunpack.c.l.b16 %v343
        %v437 = vunpack.c.h.b16 %v343
        %v438 = vunpack.c.l.b16 %v344
        %v439 = vunpack.c.h.b16 %v344
        %v440 = vunpack.c.l.b16 %v345
        %v441 = vunpack.c.h.b16 %v345
        %v442 = vunpack.c.l.b16 %v346
        %v443 = vunpack.c.h.b16 %v346
        %v444 = vunpack.c.l.b16 %v347
        %v445 = vunpack.c.h.b16 %v347
        %v446 = vunpack.c.l.b16 %v348
        %v447 = vunpack.c.h.b16 %v348
        %v448 = vunpack.c.l.b16 %v349
        %v449 = vunpack.c.h.b16 %v349
        %v450 = vunpack.c.l.b16 %v350
        %v451 = vunpack.c.h.b16 %v350
        %v452 = vunpack.c.l.b16 %v351
        %v453 = vunpack.c.h.b16 %v351
        %v454 = vpack.c.b16 %v392, %v390
        %v455 = vpack.c.b16 %v393, %v391
        %v456 = vpack.c.b16 %v396, %v394
        %v457 = vpack.c.b16 %v397, %v395
        %v458 = vpack.c.b16 %v400, %v398
        %v459 = vpack.c.b16 %v401, %v399
        %v460 = vpack.c.b16 %v404, %v402
        %v461 = vpack.c.b16 %v405, %v403
        %v462 = vpack.c.b16 %v408, %v406
        %v463 = vpack.c.b16 %v409, %v407
        %v464 = vpack.c.b16 %v412, %v410
        %v465 = vpack.c.b16 %v413, %v411
        %v466 = vpack.c.b16 %v416, %v414
        %v467 = vpack.c.b16 %v417, %v415
        %v468 = vpack.c.b16 %v420, %v418
        %v469 = vpack.c.b16 %v421, %v419
        %v470 = vpack.c.b16 %v424, %v422
        %v471 = vpack.c.b16 %v425, %v423
        %v472 = vpack.c.b16 %v428, %v426
        %v473 = vpack.c.b16 %v429, %v427
        %v474 = vpack.c.b16 %v432, %v430
        %v475 = vpack.c.b16 %v433, %v431
        %v476 = vpack.c.b16 %v436, %v434
        %v477 = vpack.c.b16 %v437, %v435
        %v478 = vpack.c.b16 %v440, %v438
        %v479 = vpack.c.b16 %v441, %v439
        %v480 = vpack.c.b16 %v444, %v442
        %v481 = vpack.c.b16 %v445, %v443
        %v482 = vpack.c.b16 %v448, %v446
        %v483 = vpack.c.b16 %v449, %v447
        %v484 = vpack.c.b16 %v452, %v450
        %v485 = vpack.c.b16 %v453, %v451
        %518 = vmatpush.bf16.msra.mxu0 %v468
        %519 = vmatpush.bf16.msra.mxu0 %v466
        %520 = vmatpush.bf16.msra.mxu0 %v464
        %521 = vmatpush.bf16.msra.mxu0 %v462
        %522 = vmatpush.bf16.msra.mxu0 %v460
        %523 = vmatpush.bf16.msra.mxu0 %v458
        %524 = vmatpush.bf16.msra.mxu0 %v456
        %525 = vmatpush.bf16.msra.mxu0 %v454
        %526 = vmatmul.bf16.gmra.mxu0 %v312
        %v527 = vpop.f32.mrf.mxu0
        %v528 = vadd.f32 %v354, %v527
        %v529 = vpop.f32.mrf.mxu0
        %v530 = vadd.f32 %v354, %v529
        %531 = vmatmul.bf16.gmra.mxu0 %v314
        %v532 = vpop.f32.mrf.mxu0
        %v533 = vadd.f32 %v354, %v532
        %v534 = vpop.f32.mrf.mxu0
        %v535 = vadd.f32 %v354, %v534
        %536 = vmatmul.bf16.gmra.mxu0 %v316
        %v537 = vpop.f32.mrf.mxu0
        %v538 = vadd.f32 %v354, %v537
        %v539 = vpop.f32.mrf.mxu0
        %v540 = vadd.f32 %v354, %v539
        %541 = vmatmul.bf16.gmra.mxu0 %v318
        %v542 = vpop.f32.mrf.mxu0
        %v543 = vadd.f32 %v354, %v542
        %v544 = vpop.f32.mrf.mxu0
        %v545 = vadd.f32 %v354, %v544
        %546 = vdwg.mxu0
        %547 = vmatpush.bf16.msra.mxu0 %v484
        %548 = vmatpush.bf16.msra.mxu0 %v482
        %549 = vmatpush.bf16.msra.mxu0 %v480
        %550 = vmatpush.bf16.msra.mxu0 %v478
        %551 = vmatpush.bf16.msra.mxu0 %v476
        %552 = vmatpush.bf16.msra.mxu0 %v474
        %553 = vmatpush.bf16.msra.mxu0 %v472
        %554 = vmatpush.bf16.msra.mxu0 %v470
        %555 = vmatmul.bf16.gmra.mxu0 %v313
        %v556 = vpop.f32.mrf.mxu0
        %v557 = vadd.f32 %v528, %v556
        %v558 = vpop.f32.mrf.mxu0
        %v559 = vadd.f32 %v530, %v558
        %560 = vmatmul.bf16.gmra.mxu0 %v315
        %v561 = vpop.f32.mrf.mxu0
        %v562 = vadd.f32 %v533, %v561
        %v563 = vpop.f32.mrf.mxu0
        %v564 = vadd.f32 %v535, %v563
        %565 = vmatmul.bf16.gmra.mxu0 %v317
        %v566 = vpop.f32.mrf.mxu0
        %v567 = vadd.f32 %v538, %v566
        %v568 = vpop.f32.mrf.mxu0
        %v569 = vadd.f32 %v540, %v568
        %570 = vmatmul.bf16.gmra.mxu0 %v319
        %v571 = vpop.f32.mrf.mxu0
        %v572 = vadd.f32 %v543, %v571
        %v573 = vpop.f32.mrf.mxu0
        %v574 = vadd.f32 %v545, %v573
        %575 = vdwg.mxu0
        %576 = vmatpush.bf16.msra.mxu0 %v469
        %577 = vmatpush.bf16.msra.mxu0 %v467
        %578 = vmatpush.bf16.msra.mxu0 %v465
        %579 = vmatpush.bf16.msra.mxu0 %v463
        %580 = vmatpush.bf16.msra.mxu0 %v461
        %581 = vmatpush.bf16.msra.mxu0 %v459
        %582 = vmatpush.bf16.msra.mxu0 %v457
        %583 = vmatpush.bf16.msra.mxu0 %v455
        %584 = vmatmul.bf16.gmra.mxu0 %v312
        %v585 = vpop.f32.mrf.mxu0
        %v586 = vadd.f32 %v355, %v585
        %v587 = vpop.f32.mrf.mxu0
        %v588 = vadd.f32 %v355, %v587
        %589 = vmatmul.bf16.gmra.mxu0 %v314
        %v590 = vpop.f32.mrf.mxu0
        %v591 = vadd.f32 %v355, %v590
        %v592 = vpop.f32.mrf.mxu0
        %v593 = vadd.f32 %v355, %v592
        %594 = vmatmul.bf16.gmra.mxu0 %v316
        %v595 = vpop.f32.mrf.mxu0
        %v596 = vadd.f32 %v355, %v595
        %v597 = vpop.f32.mrf.mxu0
        %v598 = vadd.f32 %v355, %v597
        %599 = vmatmul.bf16.gmra.mxu0 %v318
        %v600 = vpop.f32.mrf.mxu0
        %v601 = vadd.f32 %v355, %v600
        %v602 = vpop.f32.mrf.mxu0
        %v603 = vadd.f32 %v355, %v602
        %604 = vdwg.mxu0
        %605 = vmatpush.bf16.msra.mxu0 %v485
        %606 = vmatpush.bf16.msra.mxu0 %v483
        %607 = vmatpush.bf16.msra.mxu0 %v481
        %608 = vmatpush.bf16.msra.mxu0 %v479
        %609 = vmatpush.bf16.msra.mxu0 %v477
        %610 = vmatpush.bf16.msra.mxu0 %v475
        %611 = vmatpush.bf16.msra.mxu0 %v473
        %612 = vmatpush.bf16.msra.mxu0 %v471
        %613 = vmatmul.bf16.gmra.mxu0 %v313
        %v614 = vpop.f32.mrf.mxu0
        %v615 = vadd.f32 %v586, %v614
        %v616 = vpop.f32.mrf.mxu0
        %v617 = vadd.f32 %v588, %v616
        %618 = vmatmul.bf16.gmra.mxu0 %v315
        %v619 = vpop.f32.mrf.mxu0
        %v620 = vadd.f32 %v591, %v619
        %v621 = vpop.f32.mrf.mxu0
        %v622 = vadd.f32 %v593, %v621
        %623 = vmatmul.bf16.gmra.mxu0 %v317
        %v624 = vpop.f32.mrf.mxu0
        %v625 = vadd.f32 %v596, %v624
        %v626 = vpop.f32.mrf.mxu0
        %v627 = vadd.f32 %v598, %v626
        %628 = vmatmul.bf16.gmra.mxu0 %v319
        %v629 = vpop.f32.mrf.mxu0
        %v630 = vadd.f32 %v601, %v629
        %v631 = vpop.f32.mrf.mxu0
        %v632 = vadd.f32 %v603, %v631
        %633 = vdwg.mxu0
        %v634 = vmax.f32 %v557, 0.0
        %v635 = vmax.f32 %v615, 0.0
        %v636 = vmax.f32 %v559, 0.0
        %v637 = vmax.f32 %v617, 0.0
        %v638 = vmax.f32 %v562, 0.0
        %v639 = vmax.f32 %v620, 0.0
        %v640 = vmax.f32 %v564, 0.0
        %v641 = vmax.f32 %v622, 0.0
        %v642 = vmax.f32 %v567, 0.0
        %v643 = vmax.f32 %v625, 0.0
        %v644 = vmax.f32 %v569, 0.0
        %v645 = vmax.f32 %v627, 0.0
        %v646 = vmax.f32 %v572, 0.0
        %v647 = vmax.f32 %v630, 0.0
        %v648 = vmax.f32 %v574, 0.0
        %v649 = vmax.f32 %v632, 0.0
        %v650 = vpack.c.bf16 %v636, %v634
        %v651 = vpack.c.bf16 %v637, %v635
        %v652 = vpack.c.bf16 %v640, %v638
        %v653 = vpack.c.bf16 %v641, %v639
        %v654 = vpack.c.bf16 %v644, %v642
        %v655 = vpack.c.bf16 %v645, %v643
        %v656 = vpack.c.bf16 %v648, %v646
        %v657 = vpack.c.bf16 %v649, %v647
        %v658 = vld [vmem:[#allocation8] sm:$0xff]
        %v659 = vld [vmem:[#allocation8 + $0x8] sm:$0xff]
        %v660 = vld [vmem:[#allocation8 + $0x10] sm:$0xff]
        %v661 = vld [vmem:[#allocation8 + $0x18] sm:$0xff]
        %v662 = vld [vmem:[#allocation8 + $0x20] sm:$0xff]
        %v663 = vld [vmem:[#allocation8 + $0x28] sm:$0xff]
        %v664 = vld [vmem:[#allocation8 + $0x30] sm:$0xff]
        %v665 = vld [vmem:[#allocation8 + $0x38] sm:$0xff]
        %v666 = vld [vmem:[#allocation8 + $0x40] sm:$0xff]
        %v667 = vld [vmem:[#allocation8 + $0x48] sm:$0xff]
        %v668 = vld [vmem:[#allocation8 + $0x50] sm:$0xff]
        %v669 = vld [vmem:[#allocation8 + $0x58] sm:$0xff]
        %v670 = vld [vmem:[#allocation8 + $0x60] sm:$0xff]
        %v671 = vld [vmem:[#allocation8 + $0x68] sm:$0xff]
        %v672 = vld [vmem:[#allocation8 + $0x70] sm:$0xff]
        %v673 = vld [vmem:[#allocation8 + $0x78] sm:$0xff]
        %v674 = vld [vmem:[#allocation8 + $0x80] sm:$0xff]
        %v675 = vld [vmem:[#allocation8 + $0x88] sm:$0xff]
        %v676 = vld [vmem:[#allocation8 + $0x90] sm:$0xff]
        %v677 = vld [vmem:[#allocation8 + $0x98] sm:$0xff]
        %v678 = vld [vmem:[#allocation8 + $0xa0] sm:$0xff]
        %v679 = vld [vmem:[#allocation8 + $0xa8] sm:$0xff]
        %v680 = vld [vmem:[#allocation8 + $0xb0] sm:$0xff]
        %v681 = vld [vmem:[#allocation8 + $0xb8] sm:$0xff]
        %v682 = vld [vmem:[#allocation8 + $0xc0] sm:$0xff]
        %v683 = vld [vmem:[#allocation8 + $0xc8] sm:$0xff]
        %v684 = vld [vmem:[#allocation8 + $0xd0] sm:$0xff]
        %v685 = vld [vmem:[#allocation8 + $0xd8] sm:$0xff]
        %v686 = vld [vmem:[#allocation8 + $0xe0] sm:$0xff]
        %v687 = vld [vmem:[#allocation8 + $0xe8] sm:$0xff]
        %v688 = vld [vmem:[#allocation8 + $0xf0] sm:$0xff]
        %v689 = vld [vmem:[#allocation8 + $0xf8] sm:$0xff]
        %v690 = vld [vmem:[%s4] sm:$0x3]
        %v692 = vperm.slane %v690, 0
        %v693 = vperm.slane %v690, 1
        %v728 = vunpack.c.l.b16 %v658
        %v729 = vunpack.c.h.b16 %v658
        %v730 = vunpack.c.l.b16 %v659
        %v731 = vunpack.c.h.b16 %v659
        %v732 = vunpack.c.l.b16 %v660
        %v733 = vunpack.c.h.b16 %v660
        %v734 = vunpack.c.l.b16 %v661
        %v735 = vunpack.c.h.b16 %v661
        %v736 = vunpack.c.l.b16 %v662
        %v737 = vunpack.c.h.b16 %v662
        %v738 = vunpack.c.l.b16 %v663
        %v739 = vunpack.c.h.b16 %v663
        %v740 = vunpack.c.l.b16 %v664
        %v741 = vunpack.c.h.b16 %v664
        %v742 = vunpack.c.l.b16 %v665
        %v743 = vunpack.c.h.b16 %v665
        %v744 = vunpack.c.l.b16 %v666
        %v745 = vunpack.c.h.b16 %v666
        %v746 = vunpack.c.l.b16 %v667
        %v747 = vunpack.c.h.b16 %v667
        %v748 = vunpack.c.l.b16 %v668
        %v749 = vunpack.c.h.b16 %v668
        %v750 = vunpack.c.l.b16 %v669
        %v751 = vunpack.c.h.b16 %v669
        %v752 = vunpack.c.l.b16 %v670
        %v753 = vunpack.c.h.b16 %v670
        %v754 = vunpack.c.l.b16 %v671
        %v755 = vunpack.c.h.b16 %v671
        %v756 = vunpack.c.l.b16 %v672
        %v757 = vunpack.c.h.b16 %v672
        %v758 = vunpack.c.l.b16 %v673
        %v759 = vunpack.c.h.b16 %v673
        %v760 = vunpack.c.l.b16 %v674
        %v761 = vunpack.c.h.b16 %v674
        %v762 = vunpack.c.l.b16 %v675
        %v763 = vunpack.c.h.b16 %v675
        %v764 = vunpack.c.l.b16 %v676
        %v765 = vunpack.c.h.b16 %v676
        %v766 = vunpack.c.l.b16 %v677
        %v767 = vunpack.c.h.b16 %v677
        %v768 = vunpack.c.l.b16 %v678
        %v769 = vunpack.c.h.b16 %v678
        %v770 = vunpack.c.l.b16 %v679
        %v771 = vunpack.c.h.b16 %v679
        %v772 = vunpack.c.l.b16 %v680
        %v773 = vunpack.c.h.b16 %v680
        %v774 = vunpack.c.l.b16 %v681
        %v775 = vunpack.c.h.b16 %v681
        %v776 = vunpack.c.l.b16 %v682
        %v777 = vunpack.c.h.b16 %v682
        %v778 = vunpack.c.l.b16 %v683
        %v779 = vunpack.c.h.b16 %v683
        %v780 = vunpack.c.l.b16 %v684
        %v781 = vunpack.c.h.b16 %v684
        %v782 = vunpack.c.l.b16 %v685
        %v783 = vunpack.c.h.b16 %v685
        %v784 = vunpack.c.l.b16 %v686
        %v785 = vunpack.c.h.b16 %v686
        %v786 = vunpack.c.l.b16 %v687
        %v787 = vunpack.c.h.b16 %v687
        %v788 = vunpack.c.l.b16 %v688
        %v789 = vunpack.c.h.b16 %v688
        %v790 = vunpack.c.l.b16 %v689
        %v791 = vunpack.c.h.b16 %v689
        %v792 = vpack.c.b16 %v730, %v728
        %v793 = vpack.c.b16 %v731, %v729
        %v794 = vpack.c.b16 %v734, %v732
        %v795 = vpack.c.b16 %v735, %v733
        %v796 = vpack.c.b16 %v738, %v736
        %v797 = vpack.c.b16 %v739, %v737
        %v798 = vpack.c.b16 %v742, %v740
        %v799 = vpack.c.b16 %v743, %v741
        %v800 = vpack.c.b16 %v746, %v744
        %v801 = vpack.c.b16 %v747, %v745
        %v802 = vpack.c.b16 %v750, %v748
        %v803 = vpack.c.b16 %v751, %v749
        %v804 = vpack.c.b16 %v754, %v752
        %v805 = vpack.c.b16 %v755, %v753
        %v806 = vpack.c.b16 %v758, %v756
        %v807 = vpack.c.b16 %v759, %v757
        %v808 = vpack.c.b16 %v762, %v760
        %v809 = vpack.c.b16 %v763, %v761
        %v810 = vpack.c.b16 %v766, %v764
        %v811 = vpack.c.b16 %v767, %v765
        %v812 = vpack.c.b16 %v770, %v768
        %v813 = vpack.c.b16 %v771, %v769
        %v814 = vpack.c.b16 %v774, %v772
        %v815 = vpack.c.b16 %v775, %v773
        %v816 = vpack.c.b16 %v778, %v776
        %v817 = vpack.c.b16 %v779, %v777
        %v818 = vpack.c.b16 %v782, %v780
        %v819 = vpack.c.b16 %v783, %v781
        %v820 = vpack.c.b16 %v786, %v784
        %v821 = vpack.c.b16 %v787, %v785
        %v822 = vpack.c.b16 %v790, %v788
        %v823 = vpack.c.b16 %v791, %v789
        %856 = vmatpush.bf16.msra.mxu0 %v806
        %857 = vmatpush.bf16.msra.mxu0 %v804
        %858 = vmatpush.bf16.msra.mxu0 %v802
        %859 = vmatpush.bf16.msra.mxu0 %v800
        %860 = vmatpush.bf16.msra.mxu0 %v798
        %861 = vmatpush.bf16.msra.mxu0 %v796
        %862 = vmatpush.bf16.msra.mxu0 %v794
        %863 = vmatpush.bf16.msra.mxu0 %v792
        %864 = vmatmul.bf16.gmra.mxu0 %v650
        %v865 = vpop.f32.mrf.mxu0
        %v866 = vadd.f32 %v692, %v865
        %v867 = vpop.f32.mrf.mxu0
        %v868 = vadd.f32 %v692, %v867
        %869 = vmatmul.bf16.gmra.mxu0 %v652
        %v870 = vpop.f32.mrf.mxu0
        %v871 = vadd.f32 %v692, %v870
        %v872 = vpop.f32.mrf.mxu0
        %v873 = vadd.f32 %v692, %v872
        %874 = vmatmul.bf16.gmra.mxu0 %v654
        %v875 = vpop.f32.mrf.mxu0
        %v876 = vadd.f32 %v692, %v875
        %v877 = vpop.f32.mrf.mxu0
        %v878 = vadd.f32 %v692, %v877
        %879 = vmatmul.bf16.gmra.mxu0 %v656
        %v880 = vpop.f32.mrf.mxu0
        %v881 = vadd.f32 %v692, %v880
        %v882 = vpop.f32.mrf.mxu0
        %v883 = vadd.f32 %v692, %v882
        %884 = vdwg.mxu0
        %885 = vmatpush.bf16.msra.mxu0 %v822
        %886 = vmatpush.bf16.msra.mxu0 %v820
        %887 = vmatpush.bf16.msra.mxu0 %v818
        %888 = vmatpush.bf16.msra.mxu0 %v816
        %889 = vmatpush.bf16.msra.mxu0 %v814
        %890 = vmatpush.bf16.msra.mxu0 %v812
        %891 = vmatpush.bf16.msra.mxu0 %v810
        %892 = vmatpush.bf16.msra.mxu0 %v808
        %893 = vmatmul.bf16.gmra.mxu0 %v651
        %v894 = vpop.f32.mrf.mxu0
        %v895 = vadd.f32 %v866, %v894
        %v896 = vpop.f32.mrf.mxu0
        %v897 = vadd.f32 %v868, %v896
        %898 = vmatmul.bf16.gmra.mxu0 %v653
        %v899 = vpop.f32.mrf.mxu0
        %v900 = vadd.f32 %v871, %v899
        %v901 = vpop.f32.mrf.mxu0
        %v902 = vadd.f32 %v873, %v901
        %903 = vmatmul.bf16.gmra.mxu0 %v655
        %v904 = vpop.f32.mrf.mxu0
        %v905 = vadd.f32 %v876, %v904
        %v906 = vpop.f32.mrf.mxu0
        %v907 = vadd.f32 %v878, %v906
        %908 = vmatmul.bf16.gmra.mxu0 %v657
        %v909 = vpop.f32.mrf.mxu0
        %v910 = vadd.f32 %v881, %v909
        %v911 = vpop.f32.mrf.mxu0
        %v912 = vadd.f32 %v883, %v911
        %913 = vdwg.mxu0
        %914 = vmatpush.bf16.msra.mxu0 %v807
        %915 = vmatpush.bf16.msra.mxu0 %v805
        %916 = vmatpush.bf16.msra.mxu0 %v803
        %917 = vmatpush.bf16.msra.mxu0 %v801
        %918 = vmatpush.bf16.msra.mxu0 %v799
        %919 = vmatpush.bf16.msra.mxu0 %v797
        %920 = vmatpush.bf16.msra.mxu0 %v795
        %921 = vmatpush.bf16.msra.mxu0 %v793
        %922 = vmatmul.bf16.gmra.mxu0 %v650
        %v923 = vpop.f32.mrf.mxu0
        %v924 = vadd.f32 %v693, %v923
        %v925 = vpop.f32.mrf.mxu0
        %v926 = vadd.f32 %v693, %v925
        %927 = vmatmul.bf16.gmra.mxu0 %v652
        %v928 = vpop.f32.mrf.mxu0
        %v929 = vadd.f32 %v693, %v928
        %v930 = vpop.f32.mrf.mxu0
        %v931 = vadd.f32 %v693, %v930
        %932 = vmatmul.bf16.gmra.mxu0 %v654
        %v933 = vpop.f32.mrf.mxu0
        %v934 = vadd.f32 %v693, %v933
        %v935 = vpop.f32.mrf.mxu0
        %v936 = vadd.f32 %v693, %v935
        %937 = vmatmul.bf16.gmra.mxu0 %v656
        %v938 = vpop.f32.mrf.mxu0
        %v939 = vadd.f32 %v693, %v938
        %v940 = vpop.f32.mrf.mxu0
        %v941 = vadd.f32 %v693, %v940
        %942 = vdwg.mxu0
        %943 = vmatpush.bf16.msra.mxu0 %v823
        %944 = vmatpush.bf16.msra.mxu0 %v821
        %945 = vmatpush.bf16.msra.mxu0 %v819
        %946 = vmatpush.bf16.msra.mxu0 %v817
        %947 = vmatpush.bf16.msra.mxu0 %v815
        %948 = vmatpush.bf16.msra.mxu0 %v813
        %949 = vmatpush.bf16.msra.mxu0 %v811
        %950 = vmatpush.bf16.msra.mxu0 %v809
        %951 = vmatmul.bf16.gmra.mxu0 %v651
        %v952 = vpop.f32.mrf.mxu0
        %v953 = vadd.f32 %v924, %v952
        %v954 = vpop.f32.mrf.mxu0
        %v955 = vadd.f32 %v926, %v954
        %956 = vmatmul.bf16.gmra.mxu0 %v653
        %v957 = vpop.f32.mrf.mxu0
        %v958 = vadd.f32 %v929, %v957
        %v959 = vpop.f32.mrf.mxu0
        %v960 = vadd.f32 %v931, %v959
        %961 = vmatmul.bf16.gmra.mxu0 %v655
        %v962 = vpop.f32.mrf.mxu0
        %v963 = vadd.f32 %v934, %v962
        %v964 = vpop.f32.mrf.mxu0
        %v965 = vadd.f32 %v936, %v964
        %966 = vmatmul.bf16.gmra.mxu0 %v657
        %v967 = vpop.f32.mrf.mxu0
        %v968 = vadd.f32 %v939, %v967
        %v969 = vpop.f32.mrf.mxu0
        %v970 = vadd.f32 %v941, %v969
        %971 = vdwg.mxu0
        %v972 = vmax.f32 %v895, 0.0
        %v973 = vmax.f32 %v953, 0.0
        %v974 = vmax.f32 %v897, 0.0
        %v975 = vmax.f32 %v955, 0.0
        %v976 = vmax.f32 %v900, 0.0
        %v977 = vmax.f32 %v958, 0.0
        %v978 = vmax.f32 %v902, 0.0
        %v979 = vmax.f32 %v960, 0.0
        %v980 = vmax.f32 %v905, 0.0
        %v981 = vmax.f32 %v963, 0.0
        %v982 = vmax.f32 %v907, 0.0
        %v983 = vmax.f32 %v965, 0.0
        %v984 = vmax.f32 %v910, 0.0
        %v985 = vmax.f32 %v968, 0.0
        %v986 = vmax.f32 %v912, 0.0
        %v987 = vmax.f32 %v970, 0.0
        %v988 = vadd.f32 %v972, %v296
        %v989 = vadd.f32 %v973, %v297
        %v990 = vadd.f32 %v974, %v298
        %v991 = vadd.f32 %v975, %v299
        %v992 = vadd.f32 %v976, %v300
        %v993 = vadd.f32 %v977, %v301
        %v994 = vadd.f32 %v978, %v302
        %v995 = vadd.f32 %v979, %v303
        %v996 = vadd.f32 %v980, %v304
        %v997 = vadd.f32 %v981, %v305
        %v998 = vadd.f32 %v982, %v306
        %v999 = vadd.f32 %v983, %v307
        %v1000 = vadd.f32 %v984, %v308
        %v1001 = vadd.f32 %v985, %v309
        %v1002 = vadd.f32 %v986, %v310
        %v1003 = vadd.f32 %v987, %v311
        %1004 = vst [vmem:[%s293] sm:$0xff] %v988
        %1005 = vst [vmem:[%s293 + $0x8] sm:$0xff] %v989
        %1006 = vst [vmem:[%s293 + $0x10] sm:$0xff] %v990
        %1007 = vst [vmem:[%s293 + $0x18] sm:$0xff] %v991
        %1008 = vst [vmem:[%s293 + $0x20] sm:$0xff] %v992
        %1009 = vst [vmem:[%s293 + $0x28] sm:$0xff] %v993
        %1010 = vst [vmem:[%s293 + $0x30] sm:$0xff] %v994
        %1011 = vst [vmem:[%s293 + $0x38] sm:$0xff] %v995
        %1012 = vst [vmem:[%s293 + $0x40] sm:$0xff] %v996
        %1013 = vst [vmem:[%s293 + $0x48] sm:$0xff] %v997
        %1014 = vst [vmem:[%s293 + $0x50] sm:$0xff] %v998
        %1015 = vst [vmem:[%s293 + $0x58] sm:$0xff] %v999
        %1016 = vst [vmem:[%s293 + $0x60] sm:$0xff] %v1000
        %1017 = vst [vmem:[%s293 + $0x68] sm:$0xff] %v1001
        %1018 = vst [vmem:[%s293 + $0x70] sm:$0xff] %v1002
        %1019 = vst [vmem:[%s293 + $0x78] sm:$0xff] %v1003
        %s1020 = sand.u32 %s142, 1
        %s1021 = scalar_lea.sflag [#allocation4], %s1020
        %s1022 = sand.u32 %s142, 1
        %s1023 = smul.addr %s1022, 128
        %s1024 = scalar_lea.vmem [#allocation10], %s1023
        // Predicated region
        $region57: #{tpu_custom_call.1} parent=39 // pred_check
          %p1025 = pneg %p152
        $region58: #{tpu_custom_call.1} parent=39 // pred_check_branch
          %1027 = sbr.rel (%p1025) target = $region60
        $region59: #{tpu_custom_call.1} parent=39 // pred_region
          %s1028 = smul.u32 8, %s24
          %1030 = vsyncadd %s1021, 0
          %s1031 = smul.addr %s1028, 2
          %s1032 = smul.addr %s1031, 8
          %s1033 = scalar_lea.hbm %s5, %s1032
          %s1034 = sshll.u32 %s1024, 4
          %s1035 = int_to_ptr.vmem [resolvable:$true] %s1034
          %s1036 = sshll.u32 %s1033, 4
          %s1037 = int_to_ptr.hbm [resolvable:$true] %s1036
          %1042 = dma.vmem_to_hbm [thread:$0]  %s1035, 2048, %s1037, %s1021, 256, 256, 16
        $region60: #{tpu_custom_call.1} parent=39 // pred_fallthru
          _
      $region40: #{tpu_custom_call.1} parent=5 // pred_fallthru
        _
      %p1043 = scmp.le.s32.totalorder 2, %s19
      // Predicated region
      $region61: #{tpu_custom_call.1} parent=5 // pred_check
        %p1044 = pneg %p1043
      $region62: #{tpu_custom_call.1} parent=5 // pred_check_branch
        %1046 = sbr.rel (%p1044) target = $region64
      $region63: #{tpu_custom_call.1} parent=5 // pred_region
        %s1047 = ssub.s32 %s19, 2
        // Predicated region
        $region65: #{tpu_custom_call.1} parent=63 // pred_check
          %p1048 = pneg %p158
        $region66: #{tpu_custom_call.1} parent=63 // pred_check_branch
          %1050 = sbr.rel (%p1048) target = $region68
        $region67: #{tpu_custom_call.1} parent=63 // pred_region
          %s1051 = sand.u32 %s143, 1
          %s1052 = scalar_lea.sflag [#allocation4], %s1051
          %s1053 = sand.u32 %s143, 1
          %s1054 = smul.addr %s1053, 128
          %s1055 = scalar_lea.vmem [#allocation10], %s1054
          %1057 = dma.done %s1052, 2048
        $region68: #{tpu_custom_call.1} parent=63 // pred_fallthru
          _
      $region64: #{tpu_custom_call.1} parent=5 // pred_fallthru
        _
    $region6: #{tpu_custom_call.1} parent=1 // loop_footer
      %s23 = sadd.s32 1, %s19
    $region7: #{tpu_custom_call.1} parent=1 // loop_footer_branch
      %18 = sbr.rel target = $region3
    $region8: #{tpu_custom_call.1} parent=1 // loop_exit
      _
    %1058 = vsyncpa [#allocation3], 1
    %s1059 = scalar_lea.sflag [#allocation3], 1
    %1060 = vsyncpa %s1059, 1
    %1061 = vsyncpa [#allocation6], 1
    %1062 = vsyncpa [#allocation9], 1
    %1063 = vsyncpa [#allocation4], 1
    %s1064 = scalar_lea.sflag [#allocation4], 1
    %1065 = vsyncpa %s1064, 1

</llo_original>
